<compile_context>
chip_gen: v6e
topology: v6e:2x2x1
jax: 0.10.0
libtpu: 0.0.40
codegen_flags: <defaults>
</compile_context>

<pallas_src>
import functools

import jax
import jax.numpy as jnp
from jax.experimental import pallas as pl
from jax.experimental.pallas import tpu as pltpu

D = 32   # feature dimension
K = 2    # number of flow steps
N = 8    # batch size


def _nf_kernel(params_ref, x_ref, out_ref, *, num_flows, d):
    # Row layout of the (rows, 128) parameter slab (lanes = features):
    #   row 0: mu   row 1: sigma   row 2: eps
    #   rows 3 .. 3+K-1      : w[:, k]
    #   rows 3+K .. 3+2K-1   : u[:, k]
    #   row 3+2K             : b (lane k holds b[k])
    mu = params_ref[0:1, :]        # (1, 128) lane-dense rows
    sigma = params_ref[1:2, :]
    eps = params_ref[2:3, :]
    # z_0 = mu + softplus(sigma) * eps.  Padding lanes (>= d) stay exactly 0:
    # mu/eps/w/u are zero there, so softplus(0) * 0 == 0 contributes nothing.
    z = mu + jax.nn.softplus(sigma) * eps          # (1, 128) -- one vreg

    b_row = 3 + 2 * num_flows
    for j in range(num_flows):                     # K is tiny -> unrolled at trace time
        wj = params_ref[3 + j:4 + j, :]                              # (1, 128)
        uj = params_ref[3 + num_flows + j:4 + num_flows + j, :]      # (1, 128)
        bj = params_ref[b_row:b_row + 1, j:j + 1]                    # (1, 1)
        dot = jnp.sum(wj * z, axis=-1, keepdims=True)  # single-vreg lane reduce (XLU)
        neuron = jnp.tanh(dot + bj)                    # (1, 1); tanh on the EUP
        z = z + uj * neuron                            # (1, 128)

    # logits[i] = sum_d x[i, d] * z[d]   (sublane-broadcast mul + lane reduce).
    # TODO(synk): for very large batch tiles, move this matvec onto the MXU and
    #             optionally stream x in bf16 to halve HBM traffic.
    out_ref[...] = jnp.sum(x_ref[...] * z[:, :d], axis=-1, keepdims=True)


def normalizing_flows_forward(x, w, u, b, mu, sigma, eps):
    """x: (N, D); w, u: (D, K); b: (K,); mu, sigma, eps: (D,). Returns (N, 1)."""
    n, d = x.shape
    k = w.shape[1]
    assert d <= 128, "row-layout slab assumes D <= 128 lanes"
    assert k <= d, "b row reuses the feature lanes; needs K <= D"

    f32 = jnp.float32

    # Pack every parameter into one lane-padded row slab -> a single 4 KiB DMA.
    n_rows = 3 + 2 * k + 1                       # mu, sigma, eps, w_k, u_k, b
    rows_padded = -(-n_rows // 8) * 8            # pad sublanes to a multiple of 8
    rows = [mu, sigma, eps]
    rows += [w[:, j] for j in range(k)]
    rows += [u[:, j] for j in range(k)]
    rows.append(jnp.pad(b, (0, d - k)))          # b occupies lanes 0..K-1 of its row
    slab = jnp.stack([r.astype(f32) for r in rows], axis=0)        # (n_rows, d)
    slab = jnp.pad(slab, ((0, rows_padded - n_rows), (0, 128 - d)))  # (rows_padded, 128)

    # Batch tiling: single step at toy sizes; for large N keep >= 2 grid steps
    # (v7x dual-TC) and cap the tile to amortize per-step overhead while staying
    # far under scoped VMEM (a (8192, 32) f32 tile is 1 MiB, double-buffered 2 MiB).
    if n <= 1024:
        tile_n = n
    else:
        half = -(-n // 2)
        tile_n = min(8192, -(-half // 256) * 256)
    grid = (pl.cdiv(n, tile_n),)                 # ragged last block handled by Pallas

    out = pl.pallas_call(
        functools.partial(_nf_kernel, num_flows=k, d=d),
        grid=grid,
        in_specs=[
            # Parameter slab: same (full) block every step -> stays resident in VMEM.
            pl.BlockSpec((rows_padded, 128), lambda i: (0, 0)),
            # x tile read natively: batch on sublanes, features on lanes.
            pl.BlockSpec((tile_n, d), lambda i: (i, 0)),
        ],
        out_specs=pl.BlockSpec((tile_n, 1), lambda i: (i, 0)),
        out_shape=jax.ShapeDtypeStruct((n, 1), f32),
        compiler_params=pltpu.CompilerParams(dimension_semantics=("parallel",)),
    )(slab, x.astype(f32))

    return out


if __name__ == "__main__":
    key = jax.random.PRNGKey(0)
    kx, kw, ku, kb, kmu, ksig, keps = jax.random.split(key, 7)

    # Shapes from NormalizingFlows.__init__ with D=32, K=2; batch N=8.
    x = jax.random.normal(kx, (N, D), jnp.float32)
    w = jax.random.normal(kw, (D, K), jnp.float32)
    u = jax.random.normal(ku, (D, K), jnp.float32)
    b = jax.random.normal(kb, (K,), jnp.float32)
    mu = jax.random.normal(kmu, (D,), jnp.float32)
    sigma = jax.random.normal(ksig, (D,), jnp.float32)
    # Deterministic stand-in for the torch.randn(D) drawn inside sample().
    eps = jax.random.normal(keps, (D,), jnp.float32)

    logits = normalizing_flows_forward(x, w, u, b, mu, sigma, eps)
    jax.block_until_ready(logits)
    assert logits.shape == (N, 1)

    # Pure-JAX reference of the same forward pass (correctness guard).
    z_ref = mu + jax.nn.softplus(sigma) * eps
    for kk in range(K):
        neuron = jnp.tanh(jnp.dot(w[:, kk], z_ref) + b[kk])
        z_ref = z_ref + u[:, kk] * neuron
    ref = x @ z_ref.reshape(D, 1)
    assert jnp.allclose(logits, ref, atol=1e-4, rtol=1e-4)

    print("KERNEL_OK")
</pallas_src>

<mosaic_0001>
module attributes {stable_mosaic.version = 11 : i64} {
  func.func @_nf_kernel(%arg0: i32, %arg1: memref<8x128xf32, #tpu.memory_space<vmem>>, %arg2: memref<8x32xf32, #tpu.memory_space<vmem>>, %arg3: memref<8x1xf32, #tpu.memory_space<vmem>>) attributes {dimension_semantics = [#tpu.dimension_semantics<parallel>], iteration_bounds = array<i64: 1>, scalar_prefetch = 0 : i64, scratch_operands = 0 : i64, tpu.core_type = #tpu.core_type<tc>, window_params = [{pipeline_mode = #tpu.pipeline_mode<synchronous>, transform_indices = @transform_0, window_bounds = array<i64: 8, 128>}, {transform_indices = @transform_1, window_bounds = array<i64: 8, 32>}, {transform_indices = @transform_2, window_bounds = array<i64: 8, 1>}]} {
    %c0 = arith.constant 0 : index
    %c0_0 = arith.constant 0 : index
    %0 = vector.load %arg1[%c0, %c0_0] : memref<8x128xf32, #tpu.memory_space<vmem>>, vector<1x128xf32>
    %c1 = arith.constant 1 : index
    %c0_1 = arith.constant 0 : index
    %1 = vector.load %arg1[%c1, %c0_1] : memref<8x128xf32, #tpu.memory_space<vmem>>, vector<1x128xf32>
    %c2 = arith.constant 2 : index
    %c0_2 = arith.constant 0 : index
    %2 = vector.load %arg1[%c2, %c0_2] : memref<8x128xf32, #tpu.memory_space<vmem>>, vector<1x128xf32>
    %cst = arith.constant 0.000000e+00 : f32
    %3 = vector.broadcast %cst : f32 to vector<1x128xf32>
    %4 = arith.maximumf %1, %3 : vector<1x128xf32>
    %5 = vector.broadcast %cst : f32 to vector<1x128xf32>
    %6 = arith.subf %1, %5 : vector<1x128xf32>
    %7 = arith.cmpf one, %6, %6 : vector<1x128xf32>
    %8 = vector.broadcast %cst : f32 to vector<1x128xf32>
    %9 = arith.addf %1, %8 : vector<1x128xf32>
    %10 = math.absf %6 : vector<1x128xf32>
    %cst_3 = arith.constant 0.000000e+00 : f32
    %11 = vector.broadcast %cst_3 : f32 to vector<1x128xf32>
    %12 = arith.subf %11, %10 : vector<1x128xf32>
    %13 = math.exp %12 : vector<1x128xf32>
    %14 = math.log1p %13 : vector<1x128xf32>
    %15 = arith.addf %4, %14 : vector<1x128xf32>
    %16 = arith.select %7, %9, %15 : vector<1x128xi1>, vector<1x128xf32>
    %17 = arith.mulf %16, %2 : vector<1x128xf32>
    %18 = arith.addf %0, %17 : vector<1x128xf32>
    %c3 = arith.constant 3 : index
    %c0_4 = arith.constant 0 : index
    %19 = vector.load %arg1[%c3, %c0_4] : memref<8x128xf32, #tpu.memory_space<vmem>>, vector<1x128xf32>
    %c5 = arith.constant 5 : index
    %c0_5 = arith.constant 0 : index
    %20 = vector.load %arg1[%c5, %c0_5] : memref<8x128xf32, #tpu.memory_space<vmem>>, vector<1x128xf32>
    %c7 = arith.constant 7 : index
    %c0_6 = arith.constant 0 : index
    %21 = vector.load %arg1[%c7, %c0_6] : memref<8x128xf32, #tpu.memory_space<vmem>>, vector<1x1xf32>
    %22 = arith.mulf %19, %18 : vector<1x128xf32>
    %cst_7 = arith.constant dense<0.000000e+00> : vector<1xf32>
    %23 = vector.multi_reduction <add>, %22, %cst_7 [1] : vector<1x128xf32> to vector<1xf32>
    %24 = vector.shape_cast %23 : vector<1xf32> to vector<1x1xf32>
    %25 = arith.addf %24, %21 : vector<1x1xf32>
    %26 = math.tanh %25 : vector<1x1xf32>
    %27 = vector.broadcast %26 : vector<1x1xf32> to vector<1x128xf32>
    %28 = arith.mulf %20, %27 : vector<1x128xf32>
    %29 = arith.addf %18, %28 : vector<1x128xf32>
    %c4 = arith.constant 4 : index
    %c0_8 = arith.constant 0 : index
    %30 = vector.load %arg1[%c4, %c0_8] : memref<8x128xf32, #tpu.memory_space<vmem>>, vector<1x128xf32>
    %c6 = arith.constant 6 : index
    %c0_9 = arith.constant 0 : index
    %31 = vector.load %arg1[%c6, %c0_9] : memref<8x128xf32, #tpu.memory_space<vmem>>, vector<1x128xf32>
    %c7_10 = arith.constant 7 : index
    %c1_11 = arith.constant 1 : index
    %32 = vector.load %arg1[%c7_10, %c1_11] : memref<8x128xf32, #tpu.memory_space<vmem>>, vector<1x1xf32>
    %33 = arith.mulf %30, %29 : vector<1x128xf32>
    %cst_12 = arith.constant dense<0.000000e+00> : vector<1xf32>
    %34 = vector.multi_reduction <add>, %33, %cst_12 [1] : vector<1x128xf32> to vector<1xf32>
    %35 = vector.shape_cast %34 : vector<1xf32> to vector<1x1xf32>
    %36 = arith.addf %35, %32 : vector<1x1xf32>
    %37 = math.tanh %36 : vector<1x1xf32>
    %38 = vector.broadcast %37 : vector<1x1xf32> to vector<1x128xf32>
    %39 = arith.mulf %31, %38 : vector<1x128xf32>
    %40 = arith.addf %29, %39 : vector<1x128xf32>
    %c0_13 = arith.constant 0 : index
    %c0_14 = arith.constant 0 : index
    %41 = vector.load %arg2[%c0_13, %c0_14] : memref<8x32xf32, #tpu.memory_space<vmem>>, vector<8x32xf32>
    %42 = vector.extract_strided_slice %40 {offsets = [0, 0], sizes = [1, 32], strides = [1, 1]} : vector<1x128xf32> to vector<1x32xf32>
    %43 = vector.broadcast %42 : vector<1x32xf32> to vector<8x32xf32>
    %44 = arith.mulf %41, %43 : vector<8x32xf32>
    %cst_15 = arith.constant dense<0.000000e+00> : vector<8xf32>
    %45 = vector.multi_reduction <add>, %44, %cst_15 [1] : vector<8x32xf32> to vector<8xf32>
    %46 = vector.shape_cast %45 : vector<8xf32> to vector<8x1xf32>
    %c0_16 = arith.constant 0 : index
    %c0_17 = arith.constant 0 : index
    %47 = vector.load %arg3[%c0_16, %c0_17] : memref<8x1xf32, #tpu.memory_space<vmem>>, vector<8x1xf32>
    tpu.vector_store %arg3[%c0_16, %c0_17], %46 {strides = array<i32>} : memref<8x1xf32, #tpu.memory_space<vmem>>, vector<8x1xf32>,
    return
  }
  func.func @transform_0(%arg0: i32) -> (i32, i32) {
    %c0_i32 = arith.constant 0 : i32
    %c0_i32_0 = arith.constant 0 : i32
    %c0_i32_1 = arith.constant 0 : i32
    return %c0_i32, %c0_i32_0 : i32, i32
  }
  func.func @transform_1(%arg0: i32) -> (i32, i32) {
    %c0_i32 = arith.constant 0 : i32
    %c0_i32_0 = arith.constant 0 : i32
    return %arg0, %c0_i32 : i32, i32
  }
  func.func @transform_2(%arg0: i32) -> (i32, i32) {
    %c0_i32 = arith.constant 0 : i32
    %c0_i32_0 = arith.constant 0 : i32
    return %arg0, %c0_i32 : i32, i32
  }
}

</mosaic_0001>

<llo_original>
// kernel: tpu_custom_call.1
$region0: #{tpu_custom_call.1}
  #allocation0 [shape = 'u32[]', space=smem, size = 0x4, offset = 0x4, fixed_abs, tag = 'smem constant byte address 0x4 - core index']
  #allocation1 [shape = 'u32[144,128]{1,0:T(1,128)}', space=vmem, size = 0x12000, scoped, tag = 'internal scratch']
  %s0 = inlined_call_operand.hbm [shape: f32[8,128], index: 0, kind: input, shape index: {}]
  %s1 = inlined_call_operand.hbm [shape: f32[8,32], index: 1, kind: input, shape index: {}]
  %s2 = inlined_call_operand.vmem [shape: f32[8,1], index: 2, kind: output, shape index: {}]
  %s3 = sld [smem:[#allocation0]]
  $region26: #{tpu_custom_call.1} parent=0
    _
  %s5 = ssub.s32 1, %s3
  %s6 = scalar_select 0, %s5, %s3
  $region1: #{tpu_custom_call.1} parent=0
    #allocation2 [shape = 'u8[4096]{0}', space=vmem, size = 0x1000, scoped, tag = 'input window, operand 0, single buffered']
    #allocation3 [shape = 's32[1]{0}', space=sflag, size = 0x4, scoped, tag = 'scoped memory for tpu_custom_call.1']
    #allocation4 [shape = 'u8[4096]{0}', space=vmem, size = 0x1000, scoped, tag = 'input window, operand 1, single buffered']
    #allocation5 [shape = 's32[1]{0}', space=sflag, size = 0x4, scoped, tag = 'scoped memory for tpu_custom_call.1']
    %7 = vsyncpa [#allocation3], 0
    %8 = vsyncpa [#allocation5], 0
    // Predicated region
    $region2: #{tpu_custom_call.1} parent=1 // pred_check
      _
    $region3: #{tpu_custom_call.1} parent=1 // pred_check_branch
      %10 = sbr.rel (0) target = $region5
    $region4: #{tpu_custom_call.1} parent=1 // pred_region
      %s12 = ssub.s32 128, 128
      %13 = vsyncadd [#allocation3], %s12
      %s15 = sshll.u32 [#allocation2], 4
      %s16 = int_to_ptr.vmem [resolvable:$true] %s15
      %18 = dma.hbm_to_vmem [thread:$0]  %s0, 128, %s16, [#allocation3]
    $region5: #{tpu_custom_call.1} parent=1 // pred_fallthru
      _
    // Predicated region
    $region6: #{tpu_custom_call.1} parent=1 // pred_check
      _
    $region7: #{tpu_custom_call.1} parent=1 // pred_check_branch
      %20 = sbr.rel (0) target = $region9
    $region8: #{tpu_custom_call.1} parent=1 // pred_region
      %s22 = ssub.s32 128, 128
      %23 = vsyncadd [#allocation5], %s22
      %s25 = sshll.u32 [#allocation4], 4
      %s26 = int_to_ptr.vmem [resolvable:$true] %s25
      %28 = dma.hbm_to_vmem [thread:$0]  %s1, 128, %s26, [#allocation5]
    $region9: #{tpu_custom_call.1} parent=1 // pred_fallthru
      _
    // Predicated region
    $region10: #{tpu_custom_call.1} parent=1 // pred_check
      _
    $region11: #{tpu_custom_call.1} parent=1 // pred_check_branch
      %30 = sbr.rel (0) target = $region13
    $region12: #{tpu_custom_call.1} parent=1 // pred_region
      %31 = dma.done [#allocation3], 128
    $region13: #{tpu_custom_call.1} parent=1 // pred_fallthru
      _
    // Predicated region
    $region14: #{tpu_custom_call.1} parent=1 // pred_check
      _
    $region15: #{tpu_custom_call.1} parent=1 // pred_check_branch
      %33 = sbr.rel (0) target = $region17
    $region16: #{tpu_custom_call.1} parent=1 // pred_region
      %34 = dma.done [#allocation5], 128
    $region17: #{tpu_custom_call.1} parent=1 // pred_fallthru
      _
    %v35 = vld [vmem:[#allocation2] sm:$0x1]
    %v36 = vld [vmem:[#allocation2 + $0x1] sm:$0x1]
    %v37 = vld [vmem:[#allocation2 + $0x2] sm:$0x1]
    %v38 = vmax.f32 %v36, 0.0
    %vm39 = vcmp.ne.f32.partialorder %v36, %v36
    %v40 = vadd.f32 %v36, 0.0
    %v41 = vand.u32 2147483647, %v36
    %v42 = vsub.f32 0.0, %v41
    %v43 = vmul.f32 %v42, 1.442695
    %v44 = vpow.pop %v43
    %v45 = vadd.f32 %v44, 1.0
    %v46 = vlog2.pop %v45
    %v47 = vmul.f32 %v46, 0.6931472
    %v48 = vmul.f32 -0.5, %v44
    %v49 = vadd.f32 %v48, 1.0
    %v50 = vmul.f32 %v49, %v44
    %v51 = vand.u32 2147483647, %v44
    %vm52 = vcmp.lt.f32.partialorder %v51, 0.0004427343
    %v53 = vsel %vm52, %v50, %v47
    %v54 = vadd.f32 %v38, %v53
    %v55 = vsel %vm39, %v40, %v54
    %v56 = vmul.f32 %v55, %v37
    %v57 = vadd.f32 %v35, %v56
    %v58 = vld [vmem:[#allocation2 + $0x3] sm:$0x1]
    %v59 = vld [vmem:[#allocation2 + $0x5] sm:$0x1]
    %v60 = vld [vmem:[#allocation2 + $0x7] sm:$0x1]
    %v61 = vmul.f32 %v58, %v57
    %vm62 = vcmask 1040384
    %v63 = vsel %vm62, %v61, 0.0
    %64 = vadd.xlane.f32.xlu0 %v63
    %v65 = vpop.xlane.xlu0 %64
    %v66 = vadd.f32 %v65, %v60
    %v67 = vtanh.pop %v66
    %69 = vset.pattern.permute.xlu0 0
    %70 = vperm.xlu0 %69, %v67
    %v71 = vpop.permute.xlu0 %70
    %v73 = vmul.f32 %v59, %v71
    %v74 = vadd.f32 %v57, %v73
    %v75 = vld [vmem:[#allocation2 + $0x4] sm:$0x1]
    %v76 = vld [vmem:[#allocation2 + $0x6] sm:$0x1]
    %v77 = vmul.f32 %v75, %v74
    %v78 = vsel %vm62, %v77, 0.0
    %79 = vadd.xlane.f32.xlu0 %v78
    %v80 = vpop.xlane.xlu0 %79
    %v81 = vadd.f32 %v80, %v60
    %v82 = vtanh.pop %v81
    %84 = vset.pattern.permute.xlu0 1
    %85 = vperm.xlu0 %84, %v82
    %v86 = vpop.permute.xlu0 %85
    %v88 = vmul.f32 %v76, %v86
    %v89 = vadd.f32 %v74, %v88
    %v90 = vld [vmem:[#allocation4] sm:$0xff]
    %v91 = vlaneseq
    %v92 = vshrl.u32 %v91, 7
    %v93 = vsub.s32 0, %v92
    %v94 = vrot.slane %v89, %v93
    %v95 = vmul.f32 %v90, %v94
    %vm96 = vcmask 261120
    %v97 = vsel %vm96, %v95, 0.0
    %98 = vadd.xlane.f32.xlu0 %v97
    %v99 = vpop.xlane.xlu0 %98
    %vm100 = vcmask 7168
    %101 = vst.msk [vmem:[%s2] sm:$0xff] %vm100, %v99
    // Predicated region
    $region18: #{tpu_custom_call.1} parent=1 // pred_check
      _
    $region19: #{tpu_custom_call.1} parent=1 // pred_check_branch
      %103 = sbr.rel (0) target = $region21
    $region20: #{tpu_custom_call.1} parent=1 // pred_region
      _
    $region21: #{tpu_custom_call.1} parent=1 // pred_fallthru
      _
    // Predicated region
    $region22: #{tpu_custom_call.1} parent=1 // pred_check
      _
    $region23: #{tpu_custom_call.1} parent=1 // pred_check_branch
      %105 = sbr.rel (0) target = $region25
    $region24: #{tpu_custom_call.1} parent=1 // pred_region
      _
    $region25: #{tpu_custom_call.1} parent=1 // pred_fallthru
      _
    %106 = vsyncpa [#allocation3], 1
    %107 = vsyncpa [#allocation5], 1

</llo_original>
